<compile_context>
chip_gen: v7x
topology: tpu7x:2x2x1
jax: 0.10.0
libtpu: 0.0.40
codegen_flags: <defaults>
</compile_context>

<pallas_src>
import functools

import jax
import jax.numpy as jnp
from jax.experimental import pallas as pl
from jax.experimental.pallas import tpu as pltpu

INPUT_DIM = 10
HIDDEN_DIM = 64
IN_FEATS = INPUT_DIM * 2 + 1  # 21


def _mlp_kernel(z_ref, x_ref, t_ref,
                w1z_ref, w1x_ref, w1t_ref, b1_ref,
                w2_ref, b2_ref, w3_ref, b3_ref,
                o_ref):
    # Fused concat: [z, x, t] @ w1 == z @ w1[:10] + x @ w1[10:20] + t * w1[20:21]
    h = (jnp.dot(z_ref[...], w1z_ref[...], preferred_element_type=jnp.float32)
         + jnp.dot(x_ref[...], w1x_ref[...], preferred_element_type=jnp.float32)
         + t_ref[...] * w1t_ref[...]          # (bm,1)*(1,H) f32 broadcast (VPU)
         + b1_ref[...])
    h = jnp.maximum(h, 0.0)

    h = jnp.dot(h.astype(w2_ref.dtype), w2_ref[...],
                preferred_element_type=jnp.float32) + b2_ref[...]
    h = jnp.maximum(h, 0.0)

    o_ref[...] = (jnp.dot(h.astype(w3_ref.dtype), w3_ref[...],
                          preferred_element_type=jnp.float32)
                  + b3_ref[...]).astype(o_ref.dtype)


def _round_up(n, m):
    return ((n + m - 1) // m) * m


# Per-generation tiling config: bm cap and scoped-VMEM cap for this kernel.
_GEN_CFG = {
    "v7": dict(bm_cap=4096, vmem_cap=48 << 20),   # 64 MiB physical VMEM / TC
    "v6": dict(bm_cap=8192, vmem_cap=96 << 20),   # 128 MiB physical VMEM
    "v5": dict(bm_cap=4096, vmem_cap=64 << 20),   # 128 MiB physical, slower HBM
}
_GEN_DEFAULT = dict(bm_cap=4096, vmem_cap=48 << 20)


def _tpu_generation():
    try:
        kind = jax.devices()[0].device_kind.lower()
    except Exception:
        return None
    for g in ("v7", "v6", "v5"):
        if g in kind:
            return g
    return None


def _physical_vmem_bytes():
    try:
        return int(pltpu.get_tpu_info().vmem_capacity_bytes)
    except Exception:
        return None


def _per_row_vmem_bytes(in_itemsize):
    # Every (bm, <=128) block lane-pads to 128 lanes in VMEM:
    #   z, x    : 2 bufs * 128 lanes * itemsize each
    #   t, out  : 2 bufs * 128 lanes * 4 B each (f32)
    #   temps   : ~6 live (bm, 64)->(bm, 128) f32 intermediates
    return 2 * (2 * 128 * in_itemsize) + 2 * (2 * 128 * 4) + 6 * 128 * 4


def _pick_tiling(B, in_itemsize):
    cfg = _GEN_CFG.get(_tpu_generation(), _GEN_DEFAULT)
    bm_cap, vmem_cap = cfg["bm_cap"], cfg["vmem_cap"]
    phys = _physical_vmem_bytes()
    if phys is not None:
        vmem_cap = min(vmem_cap, (phys * 3) // 4)

    per_row = _per_row_vmem_bytes(in_itemsize)
    headroom = 4 << 20  # resident weights, double-buffer bookkeeping, scratch
    bm_cap = min(bm_cap, max(8, ((vmem_cap - headroom) // per_row) // 8 * 8))

    Br = _round_up(B, 8)
    if Br <= bm_cap and B < 1024:
        bm = Br                              # tiny batch: one step
    else:
        steps = max(2, -(-Br // bm_cap))     # split the batch
        if steps % 2:
            steps += 1                       # even step count -> balanced megacore
        bm = max(8, _round_up(-(-B // steps), 8))

    # 1.5x safety on the usage estimate, floored at 16 MiB, capped per-generation.
    vmem_bytes = int(min(vmem_cap, max(16 << 20, bm * per_row * 3 // 2 + headroom)))
    return bm, vmem_bytes


@functools.partial(jax.jit, static_argnames=("bm", "use_bf16"))
def score_network_forward(z, x, t, params, *, bm=None, use_bf16=False):
    """z: (B, 10), x: (B, 10), t: (B,) or (B, 1) -> (B, 10) float32."""
    w1, b1, w2, b2, w3, b3 = params
    B = z.shape[0]
    t = jnp.asarray(t, jnp.float32).reshape(B, 1)   # torch: t.expand(-1, 1)

    in_dtype = jnp.bfloat16 if use_bf16 else jnp.float32
    itemsize = 2 if use_bf16 else 4
    z = z.astype(in_dtype)
    x = x.astype(in_dtype)

    if bm is None:
        bm, vmem_bytes = _pick_tiling(B, itemsize)
    else:
        vmem_bytes = int(max(16 << 20,
                             bm * _per_row_vmem_bytes(itemsize) * 3 // 2 + (4 << 20)))

    Bp = _round_up(B, bm)
    if Bp != B:
        pad = Bp - B
        z = jnp.pad(z, ((0, pad), (0, 0)))
        x = jnp.pad(x, ((0, pad), (0, 0)))
        t = jnp.pad(t, ((0, pad), (0, 0)))
    grid = (Bp // bm,)

    # Split w1 at trace time so the concat is fused in-kernel.
    w1z = w1[:INPUT_DIM, :].astype(in_dtype)
    w1x = w1[INPUT_DIM:2 * INPUT_DIM, :].astype(in_dtype)
    w1t = w1[2 * INPUT_DIM:, :]                      # (1, H), stays f32
    w2c = w2.astype(in_dtype)
    w3c = w3.astype(in_dtype)

    def rep(a):
        shape = a.shape
        return pl.BlockSpec(shape, lambda i: tuple(0 for _ in shape))

    flops = 2 * Bp * (IN_FEATS * HIDDEN_DIM + HIDDEN_DIM * HIDDEN_DIM
                      + HIDDEN_DIM * INPUT_DIM)
    bytes_accessed = (Bp * (2 * INPUT_DIM * itemsize + 4 + INPUT_DIM * 4)
                      + sum(int(a.size) * 4 for a in (w1, b1, w2, b2, w3, b3)))

    out = pl.pallas_call(
        _mlp_kernel,
        out_shape=jax.ShapeDtypeStruct((Bp, INPUT_DIM), jnp.float32),
        grid=grid,
        in_specs=[
            pl.BlockSpec((bm, INPUT_DIM), lambda i: (i, 0)),  # z
            pl.BlockSpec((bm, INPUT_DIM), lambda i: (i, 0)),  # x
            pl.BlockSpec((bm, 1), lambda i: (i, 0)),          # t
            rep(w1z), rep(w1x), rep(w1t), rep(b1),
            rep(w2c), rep(b2),
            rep(w3c), rep(b3),
        ],
        out_specs=pl.BlockSpec((bm, INPUT_DIM), lambda i: (i, 0)),
        compiler_params=pltpu.CompilerParams(
            dimension_semantics=("parallel",),
            vmem_limit_bytes=vmem_bytes,
        ),
        cost_estimate=pl.CostEstimate(flops=flops, transcendentals=0,
                                      bytes_accessed=bytes_accessed),
    )(z, x, t, w1z, w1x, w1t, b1, w2c, b2, w3c, b3)
    return out[:B]


def init_params(key):
    """Deterministic init matching nn.Linear's U(-1/sqrt(fan_in), 1/sqrt(fan_in))."""
    def linear(key, fan_in, fan_out):
        kw, kb = jax.random.split(key)
        bound = 1.0 / jnp.sqrt(fan_in)
        w = jax.random.uniform(kw, (fan_in, fan_out), jnp.float32, -bound, bound)
        b = jax.random.uniform(kb, (1, fan_out), jnp.float32, -bound, bound)
        return w, b

    k1, k2, k3 = jax.random.split(key, 3)
    w1, b1 = linear(k1, IN_FEATS, HIDDEN_DIM)
    w2, b2 = linear(k2, HIDDEN_DIM, HIDDEN_DIM)
    w3, b3 = linear(k3, HIDDEN_DIM, INPUT_DIM)
    return (w1, b1, w2, b2, w3, b3)


def reference_forward(z, x, t, params):
    w1, b1, w2, b2, w3, b3 = params
    t = jnp.asarray(t, jnp.float32).reshape(z.shape[0], 1)
    xin = jnp.concatenate([z.astype(jnp.float32), x.astype(jnp.float32), t], axis=-1)
    h = jnp.maximum(xin @ w1 + b1, 0.0)
    h = jnp.maximum(h @ w2 + b2, 0.0)
    return h @ w3 + b3


if __name__ == "__main__":
    key = jax.random.PRNGKey(0)
    params = init_params(jax.random.fold_in(key, 1))

    # Small batches plus one large non-multiple batch to exercise the padded,
    # multi-step (even step count) tiled path.
    last = None
    for B in (8, 200, 4500):
        kz, kx, kt = jax.random.split(jax.random.fold_in(key, B), 3)
        z = jax.random.normal(kz, (B, INPUT_DIM), jnp.float32)
        x = jax.random.normal(kx, (B, INPUT_DIM), jnp.float32)
        t = jax.random.uniform(kt, (B, 1), jnp.float32)
        if B == 8:
            t = t[:, 0]  # exercise 1-D t (matches t.expand(-1, 1) semantics)

        out = score_network_forward(z, x, t, params)
        jax.block_until_ready(out)
        ref = reference_forward(z, x, t, params)
        assert out.shape == (B, INPUT_DIM)
        assert jnp.allclose(out, ref, atol=2e-5, rtol=2e-5), "f32 path mismatch"
        last = (z, x, t)

    # Optional bf16-input path: caller-supplied bf16 z/x are DMA'd as bf16
    # (half the input HBM bytes); accumulation / bias / ReLU / output stay f32.
    z, x, t = last
    zb, xb = z.astype(jnp.bfloat16), x.astype(jnp.bfloat16)
    out_bf16 = score_network_forward(zb, xb, t, params, use_bf16=True)
    jax.block_until_ready(out_bf16)
    ref_bf16 = reference_forward(zb, xb, t, params)
    assert jnp.allclose(out_bf16, ref_bf16, atol=3e-2, rtol=3e-2), "bf16 path mismatch"

    print("KERNEL_OK")
</pallas_src>

<mosaic_0001>
module attributes {stable_mosaic.version = 11 : i64} {
  func.func @_mlp_kernel(%arg0: i32, %arg1: memref<8x10xf32, #tpu.memory_space<vmem>>, %arg2: memref<8x10xf32, #tpu.memory_space<vmem>>, %arg3: memref<8x1xf32, #tpu.memory_space<vmem>>, %arg4: memref<10x64xf32, #tpu.memory_space<vmem>>, %arg5: memref<10x64xf32, #tpu.memory_space<vmem>>, %arg6: memref<1x64xf32, #tpu.memory_space<vmem>>, %arg7: memref<1x64xf32, #tpu.memory_space<vmem>>, %arg8: memref<64x64xf32, #tpu.memory_space<vmem>>, %arg9: memref<1x64xf32, #tpu.memory_space<vmem>>, %arg10: memref<64x10xf32, #tpu.memory_space<vmem>>, %arg11: memref<1x10xf32, #tpu.memory_space<vmem>>, %arg12: memref<8x10xf32, #tpu.memory_space<vmem>>) attributes {dimension_semantics = [#tpu.dimension_semantics<parallel>], iteration_bounds = array<i64: 1>, scalar_prefetch = 0 : i64, scratch_operands = 0 : i64, tpu.core_type = #tpu.core_type<tc>, window_params = [{transform_indices = @transform_0, window_bounds = array<i64: 8, 10>}, {transform_indices = @transform_1, window_bounds = array<i64: 8, 10>}, {transform_indices = @transform_2, window_bounds = array<i64: 8, 1>}, {pipeline_mode = #tpu.pipeline_mode<synchronous>, transform_indices = @transform_3, window_bounds = array<i64: 10, 64>}, {pipeline_mode = #tpu.pipeline_mode<synchronous>, transform_indices = @transform_4, window_bounds = array<i64: 10, 64>}, {pipeline_mode = #tpu.pipeline_mode<synchronous>, transform_indices = @transform_5, window_bounds = array<i64: 1, 64>}, {pipeline_mode = #tpu.pipeline_mode<synchronous>, transform_indices = @transform_6, window_bounds = array<i64: 1, 64>}, {pipeline_mode = #tpu.pipeline_mode<synchronous>, transform_indices = @transform_7, window_bounds = array<i64: 64, 64>}, {pipeline_mode = #tpu.pipeline_mode<synchronous>, transform_indices = @transform_8, window_bounds = array<i64: 1, 64>}, {pipeline_mode = #tpu.pipeline_mode<synchronous>, transform_indices = @transform_9, window_bounds = array<i64: 64, 10>}, {pipeline_mode = #tpu.pipeline_mode<synchronous>, transform_indices = @transform_10, window_bounds = array<i64: 1, 10>}, {transform_indices = @transform_11, window_bounds = array<i64: 8, 10>}]} {
    %c0 = arith.constant 0 : index
    %c0_0 = arith.constant 0 : index
    %0 = vector.load %arg1[%c0, %c0_0] : memref<8x10xf32, #tpu.memory_space<vmem>>, vector<8x10xf32>
    %c0_1 = arith.constant 0 : index
    %c0_2 = arith.constant 0 : index
    %1 = vector.load %arg4[%c0_1, %c0_2] : memref<10x64xf32, #tpu.memory_space<vmem>>, vector<10x64xf32>
    %cst = arith.constant dense<0.000000e+00> : vector<8x64xf32>
    %2 = tpu.matmul %0, %1, %cst {dimension_numbers = #tpu.dot_dimension_numbers<[1], [0], [0], [1], [0, 0, 1, 1], [], []>} : vector<8x10xf32>, vector<10x64xf32>, vector<8x64xf32> -> vector<8x64xf32>
    %c0_3 = arith.constant 0 : index
    %c0_4 = arith.constant 0 : index
    %3 = vector.load %arg2[%c0_3, %c0_4] : memref<8x10xf32, #tpu.memory_space<vmem>>, vector<8x10xf32>
    %c0_5 = arith.constant 0 : index
    %c0_6 = arith.constant 0 : index
    %4 = vector.load %arg5[%c0_5, %c0_6] : memref<10x64xf32, #tpu.memory_space<vmem>>, vector<10x64xf32>
    %cst_7 = arith.constant dense<0.000000e+00> : vector<8x64xf32>
    %5 = tpu.matmul %3, %4, %cst_7 {dimension_numbers = #tpu.dot_dimension_numbers<[1], [0], [0], [1], [0, 0, 1, 1], [], []>} : vector<8x10xf32>, vector<10x64xf32>, vector<8x64xf32> -> vector<8x64xf32>
    %6 = arith.addf %2, %5 : vector<8x64xf32>
    %c0_8 = arith.constant 0 : index
    %c0_9 = arith.constant 0 : index
    %7 = vector.load %arg3[%c0_8, %c0_9] : memref<8x1xf32, #tpu.memory_space<vmem>>, vector<8x1xf32>
    %c0_10 = arith.constant 0 : index
    %c0_11 = arith.constant 0 : index
    %8 = vector.load %arg6[%c0_10, %c0_11] : memref<1x64xf32, #tpu.memory_space<vmem>>, vector<1x64xf32>
    %9 = vector.broadcast %7 : vector<8x1xf32> to vector<8x64xf32>
    %10 = vector.broadcast %8 : vector<1x64xf32> to vector<8x64xf32>
    %11 = arith.mulf %9, %10 : vector<8x64xf32>
    %12 = arith.addf %6, %11 : vector<8x64xf32>
    %c0_12 = arith.constant 0 : index
    %c0_13 = arith.constant 0 : index
    %13 = vector.load %arg7[%c0_12, %c0_13] : memref<1x64xf32, #tpu.memory_space<vmem>>, vector<1x64xf32>
    %14 = vector.broadcast %13 : vector<1x64xf32> to vector<8x64xf32>
    %15 = arith.addf %12, %14 : vector<8x64xf32>
    %cst_14 = arith.constant 0.000000e+00 : f32
    %16 = vector.broadcast %cst_14 : f32 to vector<8x64xf32>
    %17 = arith.maximumf %15, %16 : vector<8x64xf32>
    %c0_15 = arith.constant 0 : index
    %c0_16 = arith.constant 0 : index
    %18 = vector.load %arg8[%c0_15, %c0_16] : memref<64x64xf32, #tpu.memory_space<vmem>>, vector<64x64xf32>
    %cst_17 = arith.constant dense<0.000000e+00> : vector<8x64xf32>
    %19 = tpu.matmul %17, %18, %cst_17 {dimension_numbers = #tpu.dot_dimension_numbers<[1], [0], [0], [1], [0, 0, 1, 1], [], []>} : vector<8x64xf32>, vector<64x64xf32>, vector<8x64xf32> -> vector<8x64xf32>
    %c0_18 = arith.constant 0 : index
    %c0_19 = arith.constant 0 : index
    %20 = vector.load %arg9[%c0_18, %c0_19] : memref<1x64xf32, #tpu.memory_space<vmem>>, vector<1x64xf32>
    %21 = vector.broadcast %20 : vector<1x64xf32> to vector<8x64xf32>
    %22 = arith.addf %19, %21 : vector<8x64xf32>
    %cst_20 = arith.constant 0.000000e+00 : f32
    %23 = vector.broadcast %cst_20 : f32 to vector<8x64xf32>
    %24 = arith.maximumf %22, %23 : vector<8x64xf32>
    %c0_21 = arith.constant 0 : index
    %c0_22 = arith.constant 0 : index
    %25 = vector.load %arg10[%c0_21, %c0_22] : memref<64x10xf32, #tpu.memory_space<vmem>>, vector<64x10xf32>
    %cst_23 = arith.constant dense<0.000000e+00> : vector<8x10xf32>
    %26 = tpu.matmul %24, %25, %cst_23 {dimension_numbers = #tpu.dot_dimension_numbers<[1], [0], [0], [1], [0, 0, 1, 1], [], []>} : vector<8x64xf32>, vector<64x10xf32>, vector<8x10xf32> -> vector<8x10xf32>
    %c0_24 = arith.constant 0 : index
    %c0_25 = arith.constant 0 : index
    %27 = vector.load %arg11[%c0_24, %c0_25] : memref<1x10xf32, #tpu.memory_space<vmem>>, vector<1x10xf32>
    %28 = vector.broadcast %27 : vector<1x10xf32> to vector<8x10xf32>
    %29 = arith.addf %26, %28 : vector<8x10xf32>
    %c0_26 = arith.constant 0 : index
    %c0_27 = arith.constant 0 : index
    %30 = vector.load %arg12[%c0_26, %c0_27] : memref<8x10xf32, #tpu.memory_space<vmem>>, vector<8x10xf32>
    tpu.vector_store %arg12[%c0_26, %c0_27], %29 {strides = array<i32>} : memref<8x10xf32, #tpu.memory_space<vmem>>, vector<8x10xf32>,
    return
  }
  func.func @transform_0(%arg0: i32) -> (i32, i32) {
    %c0_i32 = arith.constant 0 : i32
    %c0_i32_0 = arith.constant 0 : i32
    return %arg0, %c0_i32 : i32, i32
  }
  func.func @transform_1(%arg0: i32) -> (i32, i32) {
    %c0_i32 = arith.constant 0 : i32
    %c0_i32_0 = arith.constant 0 : i32
    return %arg0, %c0_i32 : i32, i32
  }
  func.func @transform_2(%arg0: i32) -> (i32, i32) {
    %c0_i32 = arith.constant 0 : i32
    %c0_i32_0 = arith.constant 0 : i32
    return %arg0, %c0_i32 : i32, i32
  }
  func.func @transform_3(%arg0: i32) -> (i32, i32) {
    %c0_i32 = arith.constant 0 : i32
    %c0_i32_0 = arith.constant 0 : i32
    %c0_i32_1 = arith.constant 0 : i32
    return %c0_i32, %c0_i32_0 : i32, i32
  }
  func.func @transform_4(%arg0: i32) -> (i32, i32) {
    %c0_i32 = arith.constant 0 : i32
    %c0_i32_0 = arith.constant 0 : i32
    %c0_i32_1 = arith.constant 0 : i32
    return %c0_i32, %c0_i32_0 : i32, i32
  }
  func.func @transform_5(%arg0: i32) -> (i32, i32) {
    %c0_i32 = arith.constant 0 : i32
    %c0_i32_0 = arith.constant 0 : i32
    %c0_i32_1 = arith.constant 0 : i32
    return %c0_i32, %c0_i32_0 : i32, i32
  }
  func.func @transform_6(%arg0: i32) -> (i32, i32) {
    %c0_i32 = arith.constant 0 : i32
    %c0_i32_0 = arith.constant 0 : i32
    %c0_i32_1 = arith.constant 0 : i32
    return %c0_i32, %c0_i32_0 : i32, i32
  }
  func.func @transform_7(%arg0: i32) -> (i32, i32) {
    %c0_i32 = arith.constant 0 : i32
    %c0_i32_0 = arith.constant 0 : i32
    %c0_i32_1 = arith.constant 0 : i32
    return %c0_i32, %c0_i32_0 : i32, i32
  }
  func.func @transform_8(%arg0: i32) -> (i32, i32) {
    %c0_i32 = arith.constant 0 : i32
    %c0_i32_0 = arith.constant 0 : i32
    %c0_i32_1 = arith.constant 0 : i32
    return %c0_i32, %c0_i32_0 : i32, i32
  }
  func.func @transform_9(%arg0: i32) -> (i32, i32) {
    %c0_i32 = arith.constant 0 : i32
    %c0_i32_0 = arith.constant 0 : i32
    %c0_i32_1 = arith.constant 0 : i32
    return %c0_i32, %c0_i32_0 : i32, i32
  }
  func.func @transform_10(%arg0: i32) -> (i32, i32) {
    %c0_i32 = arith.constant 0 : i32
    %c0_i32_0 = arith.constant 0 : i32
    %c0_i32_1 = arith.constant 0 : i32
    return %c0_i32, %c0_i32_0 : i32, i32
  }
  func.func @transform_11(%arg0: i32) -> (i32, i32) {
    %c0_i32 = arith.constant 0 : i32
    %c0_i32_0 = arith.constant 0 : i32
    return %arg0, %c0_i32 : i32, i32
  }
}

</mosaic_0001>

<llo_original>
// kernel: score_network_forward.1
$region0: #{score_network_forward.1}
  #allocation0 [shape = 'u32[]', space=smem, size = 0x4, offset = 0x4, fixed_abs, tag = 'smem constant byte address 0x4 - core index']
  #allocation1 [shape = 'u32[144,128]{1,0:T(1,128)}', space=vmem, size = 0x12000, scoped, tag = 'internal scratch']
  %s0 = inlined_call_operand.vmem [shape: f32[8,10], index: 0, kind: input, shape index: {}]
  %s1 = inlined_call_operand.vmem [shape: f32[8,10], index: 1, kind: input, shape index: {}]
  %s2 = inlined_call_operand.vmem [shape: f32[8,1], index: 2, kind: input, shape index: {}]
  %s3 = inlined_call_operand.vmem [shape: f32[10,64], index: 3, kind: input, shape index: {}]
  %s4 = inlined_call_operand.vmem [shape: f32[10,64], index: 4, kind: input, shape index: {}]
  %s5 = inlined_call_operand.vmem [shape: f32[1,64], index: 5, kind: input, shape index: {}]
  %s6 = inlined_call_operand.vmem [shape: f32[1,64], index: 6, kind: input, shape index: {}]
  %s7 = inlined_call_operand.vmem [shape: f32[64,64], index: 7, kind: input, shape index: {}]
  %s8 = inlined_call_operand.vmem [shape: f32[1,64], index: 8, kind: input, shape index: {}]
  %s9 = inlined_call_operand.vmem [shape: f32[64,10], index: 9, kind: input, shape index: {}]
  %s10 = inlined_call_operand.vmem [shape: f32[1,10], index: 10, kind: input, shape index: {}]
  %s11 = inlined_call_operand.hbm [shape: f32[8,10], index: 11, kind: output, shape index: {}]
  %s12 = sld [smem:[#allocation0]]
  $region54: #{score_network_forward.1} parent=0
    _
  %s14 = ssub.s32 1, %s12
  %s15 = scalar_select 0, %s14, %s12
  $region1: #{score_network_forward.1} parent=0
    #allocation2 [shape = 'u8[4096]{0}', space=vmem, size = 0x1000, scoped, tag = 'output window, operand 0, single buffered']
    #allocation3 [shape = 's32[1]{0}', space=sflag, size = 0x4, scoped, tag = 'scoped memory for score_network_forward.1']
    %16 = vsyncpa [#allocation3], 0
    // Predicated region
    $region2: #{score_network_forward.1} parent=1 // pred_check
      _
    $region3: #{score_network_forward.1} parent=1 // pred_check_branch
      %18 = sbr.rel (0) target = $region5
    $region4: #{score_network_forward.1} parent=1 // pred_region
      _
    $region5: #{score_network_forward.1} parent=1 // pred_fallthru
      _
    // Predicated region
    $region6: #{score_network_forward.1} parent=1 // pred_check
      _
    $region7: #{score_network_forward.1} parent=1 // pred_check_branch
      %20 = sbr.rel (0) target = $region9
    $region8: #{score_network_forward.1} parent=1 // pred_region
      _
    $region9: #{score_network_forward.1} parent=1 // pred_fallthru
      _
    // Predicated region
    $region10: #{score_network_forward.1} parent=1 // pred_check
      _
    $region11: #{score_network_forward.1} parent=1 // pred_check_branch
      %22 = sbr.rel (0) target = $region13
    $region12: #{score_network_forward.1} parent=1 // pred_region
      _
    $region13: #{score_network_forward.1} parent=1 // pred_fallthru
      _
    // Predicated region
    $region14: #{score_network_forward.1} parent=1 // pred_check
      _
    $region15: #{score_network_forward.1} parent=1 // pred_check_branch
      %24 = sbr.rel (0) target = $region17
    $region16: #{score_network_forward.1} parent=1 // pred_region
      _
    $region17: #{score_network_forward.1} parent=1 // pred_fallthru
      _
    // Predicated region
    $region18: #{score_network_forward.1} parent=1 // pred_check
      _
    $region19: #{score_network_forward.1} parent=1 // pred_check_branch
      %26 = sbr.rel (0) target = $region21
    $region20: #{score_network_forward.1} parent=1 // pred_region
      _
    $region21: #{score_network_forward.1} parent=1 // pred_fallthru
      _
    // Predicated region
    $region22: #{score_network_forward.1} parent=1 // pred_check
      _
    $region23: #{score_network_forward.1} parent=1 // pred_check_branch
      %28 = sbr.rel (0) target = $region25
    $region24: #{score_network_forward.1} parent=1 // pred_region
      _
    $region25: #{score_network_forward.1} parent=1 // pred_fallthru
      _
    // Predicated region
    $region26: #{score_network_forward.1} parent=1 // pred_check
      _
    $region27: #{score_network_forward.1} parent=1 // pred_check_branch
      %30 = sbr.rel (0) target = $region29
    $region28: #{score_network_forward.1} parent=1 // pred_region
      _
    $region29: #{score_network_forward.1} parent=1 // pred_fallthru
      _
    // Predicated region
    $region30: #{score_network_forward.1} parent=1 // pred_check
      _
    $region31: #{score_network_forward.1} parent=1 // pred_check_branch
      %32 = sbr.rel (0) target = $region33
    $region32: #{score_network_forward.1} parent=1 // pred_region
      _
    $region33: #{score_network_forward.1} parent=1 // pred_fallthru
      _
    // Predicated region
    $region34: #{score_network_forward.1} parent=1 // pred_check
      _
    $region35: #{score_network_forward.1} parent=1 // pred_check_branch
      %34 = sbr.rel (0) target = $region37
    $region36: #{score_network_forward.1} parent=1 // pred_region
      _
    $region37: #{score_network_forward.1} parent=1 // pred_fallthru
      _
    // Predicated region
    $region38: #{score_network_forward.1} parent=1 // pred_check
      _
    $region39: #{score_network_forward.1} parent=1 // pred_check_branch
      %36 = sbr.rel (0) target = $region41
    $region40: #{score_network_forward.1} parent=1 // pred_region
      _
    $region41: #{score_network_forward.1} parent=1 // pred_fallthru
      _
    // Predicated region
    $region42: #{score_network_forward.1} parent=1 // pred_check
      _
    $region43: #{score_network_forward.1} parent=1 // pred_check_branch
      %38 = sbr.rel (0) target = $region45
    $region44: #{score_network_forward.1} parent=1 // pred_region
      _
    $region45: #{score_network_forward.1} parent=1 // pred_fallthru
      _
    %v39 = vld [vmem:[%s0] sm:$0xff]
    %v40 = vld [vmem:[%s3] sm:$0xff]
    %v41 = vld [vmem:[%s3 + $0x8] sm:$0x3]
    %v42 = vld [vmem:[%s1] sm:$0xff]
    %v43 = vld [vmem:[%s4] sm:$0xff]
    %v44 = vld [vmem:[%s4 + $0x8] sm:$0x3]
    %vm45 = vcmask 80896
    %v47 = vsel %vm45, %v42, 0
    %vm49 = vcmask 1041408
    %v51 = vsel %vm49, %v44, 0
    %53 = vmatprep.subr.mxu0 0.0
    %54 = vmatpush1.msra.mxu0 %v43
    %55 = vmatprep.subr.mxu0 0.0
    %56 = vmatpush1.msra.mxu0 %v51
    %57 = vmatprep.subr.mxu0 0.0
    %58 = vmatpush1.msra.mxu0 0.0
    %59 = vmatprep.subr.mxu0 0.0
    %60 = vmatpush1.msra.mxu0 0.0
    %61 = vmatprep.subr.mxu0 0.0
    %62 = vmatpush1.msra.mxu0 0.0
    %63 = vmatprep.subr.mxu0 0.0
    %64 = vmatpush1.msra.mxu0 0.0
    %65 = vmatprep.subr.mxu0 0.0
    %66 = vmatpush1.msra.mxu0 0.0
    %67 = vmatprep.subr.mxu0 0.0
    %68 = vmatpush1.msra.mxu0 0.0
    %69 = vmatprep.subr.mxu0 0.0
    %70 = vmatpush1.msra.mxu0 0.0
    %71 = vmatprep.subr.mxu0 0.0
    %72 = vmatpush1.msra.mxu0 0.0
    %73 = vmatprep.subr.mxu0 0.0
    %74 = vmatpush1.msra.mxu0 0.0
    %75 = vmatprep.subr.mxu0 0.0
    %76 = vmatpush1.msra.mxu0 0.0
    %77 = vmatprep.subr.mxu0 0.0
    %78 = vmatpush1.msra.mxu0 0.0
    %79 = vmatprep.subr.mxu0 0.0
    %80 = vmatpush1.msra.mxu0 0.0
    %81 = vmatprep.subr.mxu0 0.0
    %82 = vmatpush1.msra.mxu0 0.0
    %83 = vmatprep.subr.mxu0 0.0
    %84 = vmatpush1.msra.mxu0 0.0
    %85 = vmatprep.subr.mxu0 0.0
    %86 = vmatpush1.msra.mxu0 0.0
    %87 = vmatprep.subr.mxu0 0.0
    %88 = vmatpush1.msra.mxu0 0.0
    %89 = vmatprep.subr.mxu0 0.0
    %90 = vmatpush1.msra.mxu0 0.0
    %91 = vmatprep.subr.mxu0 0.0
    %92 = vmatpush1.msra.mxu0 0.0
    %93 = vmatprep.subr.mxu0 0.0
    %94 = vmatpush1.msra.mxu0 0.0
    %95 = vmatprep.subr.mxu0 0.0
    %96 = vmatpush1.msra.mxu0 0.0
    %97 = vmatprep.subr.mxu0 0.0
    %98 = vmatpush1.msra.mxu0 0.0
    %99 = vmatprep.subr.mxu0 0.0
    %100 = vmatpush1.msra.mxu0 0.0
    %101 = vmatprep.subr.mxu0 0.0
    %102 = vmatpush1.msra.mxu0 0.0
    %103 = vmatprep.subr.mxu0 0.0
    %104 = vmatpush1.msra.mxu0 0.0
    %105 = vmatprep.subr.mxu0 0.0
    %106 = vmatpush1.msra.mxu0 0.0
    %107 = vmatprep.subr.mxu0 0.0
    %108 = vmatpush1.msra.mxu0 0.0
    %109 = vmatprep.subr.mxu0 0.0
    %110 = vmatpush1.msra.mxu0 0.0
    %111 = vmatprep.subr.mxu0 0.0
    %112 = vmatpush1.msra.mxu0 0.0
    %113 = vmatprep.subr.mxu0 0.0
    %114 = vmatpush1.msra.mxu0 0.0
    %115 = vmatprep.subr.mxu0 0.0
    %116 = vmatpush1.msra.mxu0 0.0
    %117 = vmatprep.mubr.f32.mxu0 0.0
    %118 = vmatmul.mubr.f32.gmra.mrb[0].mxu0 %v47
    %v119 = vpop.f32.mrb[0].mxu0
    %v120 = vadd.f32 0.0, %v119
    %v121 = vpop.f32.mrb[0].mxu0
    %122 = vdwg.mxu0
    %v124 = vsel %vm45, %v39, 0
    %v127 = vsel %vm49, %v41, 0
    %129 = vmatprep.subr.mxu0 0.0
    %130 = vmatpush1.msra.mxu0 %v40
    %131 = vmatprep.subr.mxu0 0.0
    %132 = vmatpush1.msra.mxu0 %v127
    %133 = vmatprep.subr.mxu0 0.0
    %134 = vmatpush1.msra.mxu0 0.0
    %135 = vmatprep.subr.mxu0 0.0
    %136 = vmatpush1.msra.mxu0 0.0
    %137 = vmatprep.subr.mxu0 0.0
    %138 = vmatpush1.msra.mxu0 0.0
    %139 = vmatprep.subr.mxu0 0.0
    %140 = vmatpush1.msra.mxu0 0.0
    %141 = vmatprep.subr.mxu0 0.0
    %142 = vmatpush1.msra.mxu0 0.0
    %143 = vmatprep.subr.mxu0 0.0
    %144 = vmatpush1.msra.mxu0 0.0
    %145 = vmatprep.subr.mxu0 0.0
    %146 = vmatpush1.msra.mxu0 0.0
    %147 = vmatprep.subr.mxu0 0.0
    %148 = vmatpush1.msra.mxu0 0.0
    %149 = vmatprep.subr.mxu0 0.0
    %150 = vmatpush1.msra.mxu0 0.0
    %151 = vmatprep.subr.mxu0 0.0
    %152 = vmatpush1.msra.mxu0 0.0
    %153 = vmatprep.subr.mxu0 0.0
    %154 = vmatpush1.msra.mxu0 0.0
    %155 = vmatprep.subr.mxu0 0.0
    %156 = vmatpush1.msra.mxu0 0.0
    %157 = vmatprep.subr.mxu0 0.0
    %158 = vmatpush1.msra.mxu0 0.0
    %159 = vmatprep.subr.mxu0 0.0
    %160 = vmatpush1.msra.mxu0 0.0
    %161 = vmatprep.subr.mxu0 0.0
    %162 = vmatpush1.msra.mxu0 0.0
    %163 = vmatprep.subr.mxu0 0.0
    %164 = vmatpush1.msra.mxu0 0.0
    %165 = vmatprep.subr.mxu0 0.0
    %166 = vmatpush1.msra.mxu0 0.0
    %167 = vmatprep.subr.mxu0 0.0
    %168 = vmatpush1.msra.mxu0 0.0
    %169 = vmatprep.subr.mxu0 0.0
    %170 = vmatpush1.msra.mxu0 0.0
    %171 = vmatprep.subr.mxu0 0.0
    %172 = vmatpush1.msra.mxu0 0.0
    %173 = vmatprep.subr.mxu0 0.0
    %174 = vmatpush1.msra.mxu0 0.0
    %175 = vmatprep.subr.mxu0 0.0
    %176 = vmatpush1.msra.mxu0 0.0
    %177 = vmatprep.subr.mxu0 0.0
    %178 = vmatpush1.msra.mxu0 0.0
    %179 = vmatprep.subr.mxu0 0.0
    %180 = vmatpush1.msra.mxu0 0.0
    %181 = vmatprep.subr.mxu0 0.0
    %182 = vmatpush1.msra.mxu0 0.0
    %183 = vmatprep.subr.mxu0 0.0
    %184 = vmatpush1.msra.mxu0 0.0
    %185 = vmatprep.subr.mxu0 0.0
    %186 = vmatpush1.msra.mxu0 0.0
    %187 = vmatprep.subr.mxu0 0.0
    %188 = vmatpush1.msra.mxu0 0.0
    %189 = vmatprep.subr.mxu0 0.0
    %190 = vmatpush1.msra.mxu0 0.0
    %191 = vmatprep.subr.mxu0 0.0
    %192 = vmatpush1.msra.mxu0 0.0
    %193 = vmatprep.mubr.f32.mxu0 0.0
    %194 = vmatmul.mubr.f32.gmra.mrb[0].mxu0 %v124
    %v195 = vpop.f32.mrb[0].mxu0
    %v196 = vadd.f32 %v120, %v195
    %v197 = vpop.f32.mrb[0].mxu0
    %198 = vdwg.mxu0
    %v199 = vld [vmem:[%s2] sm:$0xff]
    %v200 = vld [vmem:[%s5] sm:$0x1]
    %202 = vset.pattern.permute.xlu0 0
    %203 = vperm.xlu0 %202, %v199
    %v204 = vpop.permute.xlu0 %203
    %v207 = vlaneseq
    %v208 = vshrl.u32 %v207, 7
    %v209 = vsub.s32 0, %v208
    %v210 = vrot.slane %v200, %v209
    %v212 = vmul.f32 %v204, %v210
    %v213 = vadd.f32 %v196, %v212
    %v214 = vld [vmem:[%s6] sm:$0x1]
    %v216 = vlaneseq
    %v217 = vshrl.u32 %v216, 7
    %v218 = vsub.s32 0, %v217
    %v219 = vrot.slane %v214, %v218
    %v221 = vadd.f32 %v213, %v219
    %v222 = vmax.f32 %v221, 0.0
    %v223 = vld [vmem:[%s7] sm:$0xff]
    %v224 = vld [vmem:[%s7 + $0x8] sm:$0xff]
    %v225 = vld [vmem:[%s7 + $0x10] sm:$0xff]
    %v226 = vld [vmem:[%s7 + $0x18] sm:$0xff]
    %v227 = vld [vmem:[%s7 + $0x20] sm:$0xff]
    %v228 = vld [vmem:[%s7 + $0x28] sm:$0xff]
    %v229 = vld [vmem:[%s7 + $0x30] sm:$0xff]
    %v230 = vld [vmem:[%s7 + $0x38] sm:$0xff]
    %v231 = vld [vmem:[%s8] sm:$0x1]
    %v233 = vlaneseq
    %v234 = vshrl.u32 %v233, 7
    %v235 = vsub.s32 0, %v234
    %v236 = vrot.slane %v231, %v235
    %vm238 = vcmask 523264
    %v240 = vsel %vm238, %v222, 0
    %242 = vmatprep.subr.mxu0 0.0
    %243 = vmatpush1.msra.mxu0 %v223
    %244 = vmatprep.subr.mxu0 0.0
    %245 = vmatpush1.msra.mxu0 %v224
    %246 = vmatprep.subr.mxu0 0.0
    %247 = vmatpush1.msra.mxu0 %v225
    %248 = vmatprep.subr.mxu0 0.0
    %249 = vmatpush1.msra.mxu0 %v226
    %250 = vmatprep.subr.mxu0 0.0
    %251 = vmatpush1.msra.mxu0 %v227
    %252 = vmatprep.subr.mxu0 0.0
    %253 = vmatpush1.msra.mxu0 %v228
    %254 = vmatprep.subr.mxu0 0.0
    %255 = vmatpush1.msra.mxu0 %v229
    %256 = vmatprep.subr.mxu0 0.0
    %257 = vmatpush1.msra.mxu0 %v230
    %258 = vmatprep.subr.mxu0 0.0
    %259 = vmatpush1.msra.mxu0 0.0
    %260 = vmatprep.subr.mxu0 0.0
    %261 = vmatpush1.msra.mxu0 0.0
    %262 = vmatprep.subr.mxu0 0.0
    %263 = vmatpush1.msra.mxu0 0.0
    %264 = vmatprep.subr.mxu0 0.0
    %265 = vmatpush1.msra.mxu0 0.0
    %266 = vmatprep.subr.mxu0 0.0
    %267 = vmatpush1.msra.mxu0 0.0
    %268 = vmatprep.subr.mxu0 0.0
    %269 = vmatpush1.msra.mxu0 0.0
    %270 = vmatprep.subr.mxu0 0.0
    %271 = vmatpush1.msra.mxu0 0.0
    %272 = vmatprep.subr.mxu0 0.0
    %273 = vmatpush1.msra.mxu0 0.0
    %274 = vmatprep.subr.mxu0 0.0
    %275 = vmatpush1.msra.mxu0 0.0
    %276 = vmatprep.subr.mxu0 0.0
    %277 = vmatpush1.msra.mxu0 0.0
    %278 = vmatprep.subr.mxu0 0.0
    %279 = vmatpush1.msra.mxu0 0.0
    %280 = vmatprep.subr.mxu0 0.0
    %281 = vmatpush1.msra.mxu0 0.0
    %282 = vmatprep.subr.mxu0 0.0
    %283 = vmatpush1.msra.mxu0 0.0
    %284 = vmatprep.subr.mxu0 0.0
    %285 = vmatpush1.msra.mxu0 0.0
    %286 = vmatprep.subr.mxu0 0.0
    %287 = vmatpush1.msra.mxu0 0.0
    %288 = vmatprep.subr.mxu0 0.0
    %289 = vmatpush1.msra.mxu0 0.0
    %290 = vmatprep.subr.mxu0 0.0
    %291 = vmatpush1.msra.mxu0 0.0
    %292 = vmatprep.subr.mxu0 0.0
    %293 = vmatpush1.msra.mxu0 0.0
    %294 = vmatprep.subr.mxu0 0.0
    %295 = vmatpush1.msra.mxu0 0.0
    %296 = vmatprep.subr.mxu0 0.0
    %297 = vmatpush1.msra.mxu0 0.0
    %298 = vmatprep.subr.mxu0 0.0
    %299 = vmatpush1.msra.mxu0 0.0
    %300 = vmatprep.subr.mxu0 0.0
    %301 = vmatpush1.msra.mxu0 0.0
    %302 = vmatprep.subr.mxu0 0.0
    %303 = vmatpush1.msra.mxu0 0.0
    %304 = vmatprep.subr.mxu0 0.0
    %305 = vmatpush1.msra.mxu0 0.0
    %306 = vmatprep.mubr.f32.mxu0 0.0
    %307 = vmatmul.mubr.f32.gmra.mrb[0].mxu0 %v240
    %v308 = vpop.f32.mrb[0].mxu0
    %v309 = vadd.f32 %v236, %v308
    %v310 = vpop.f32.mrb[0].mxu0
    %311 = vdwg.mxu0
    %v312 = vmax.f32 %v309, 0.0
    %v313 = vld [vmem:[%s9] sm:$0xff]
    %v314 = vld [vmem:[%s9 + $0x8] sm:$0xff]
    %v315 = vld [vmem:[%s9 + $0x10] sm:$0xff]
    %v316 = vld [vmem:[%s9 + $0x18] sm:$0xff]
    %v317 = vld [vmem:[%s9 + $0x20] sm:$0xff]
    %v318 = vld [vmem:[%s9 + $0x28] sm:$0xff]
    %v319 = vld [vmem:[%s9 + $0x30] sm:$0xff]
    %v320 = vld [vmem:[%s9 + $0x38] sm:$0xff]
    %v321 = vld [vmem:[%s10] sm:$0x1]
    %v323 = vlaneseq
    %v324 = vshrl.u32 %v323, 7
    %v325 = vsub.s32 0, %v324
    %v326 = vrot.slane %v321, %v325
    %v329 = vsel %vm238, %v312, 0
    %331 = vmatprep.subr.mxu0 0.0
    %332 = vmatpush1.msra.mxu0 %v313
    %333 = vmatprep.subr.mxu0 0.0
    %334 = vmatpush1.msra.mxu0 %v314
    %335 = vmatprep.subr.mxu0 0.0
    %336 = vmatpush1.msra.mxu0 %v315
    %337 = vmatprep.subr.mxu0 0.0
    %338 = vmatpush1.msra.mxu0 %v316
    %339 = vmatprep.subr.mxu0 0.0
    %340 = vmatpush1.msra.mxu0 %v317
    %341 = vmatprep.subr.mxu0 0.0
    %342 = vmatpush1.msra.mxu0 %v318
    %343 = vmatprep.subr.mxu0 0.0
    %344 = vmatpush1.msra.mxu0 %v319
    %345 = vmatprep.subr.mxu0 0.0
    %346 = vmatpush1.msra.mxu0 %v320
    %347 = vmatprep.subr.mxu0 0.0
    %348 = vmatpush1.msra.mxu0 0.0
    %349 = vmatprep.subr.mxu0 0.0
    %350 = vmatpush1.msra.mxu0 0.0
    %351 = vmatprep.subr.mxu0 0.0
    %352 = vmatpush1.msra.mxu0 0.0
    %353 = vmatprep.subr.mxu0 0.0
    %354 = vmatpush1.msra.mxu0 0.0
    %355 = vmatprep.subr.mxu0 0.0
    %356 = vmatpush1.msra.mxu0 0.0
    %357 = vmatprep.subr.mxu0 0.0
    %358 = vmatpush1.msra.mxu0 0.0
    %359 = vmatprep.subr.mxu0 0.0
    %360 = vmatpush1.msra.mxu0 0.0
    %361 = vmatprep.subr.mxu0 0.0
    %362 = vmatpush1.msra.mxu0 0.0
    %363 = vmatprep.subr.mxu0 0.0
    %364 = vmatpush1.msra.mxu0 0.0
    %365 = vmatprep.subr.mxu0 0.0
    %366 = vmatpush1.msra.mxu0 0.0
    %367 = vmatprep.subr.mxu0 0.0
    %368 = vmatpush1.msra.mxu0 0.0
    %369 = vmatprep.subr.mxu0 0.0
    %370 = vmatpush1.msra.mxu0 0.0
    %371 = vmatprep.subr.mxu0 0.0
    %372 = vmatpush1.msra.mxu0 0.0
    %373 = vmatprep.subr.mxu0 0.0
    %374 = vmatpush1.msra.mxu0 0.0
    %375 = vmatprep.subr.mxu0 0.0
    %376 = vmatpush1.msra.mxu0 0.0
    %377 = vmatprep.subr.mxu0 0.0
    %378 = vmatpush1.msra.mxu0 0.0
    %379 = vmatprep.subr.mxu0 0.0
    %380 = vmatpush1.msra.mxu0 0.0
    %381 = vmatprep.subr.mxu0 0.0
    %382 = vmatpush1.msra.mxu0 0.0
    %383 = vmatprep.subr.mxu0 0.0
    %384 = vmatpush1.msra.mxu0 0.0
    %385 = vmatprep.subr.mxu0 0.0
    %386 = vmatpush1.msra.mxu0 0.0
    %387 = vmatprep.subr.mxu0 0.0
    %388 = vmatpush1.msra.mxu0 0.0
    %389 = vmatprep.subr.mxu0 0.0
    %390 = vmatpush1.msra.mxu0 0.0
    %391 = vmatprep.subr.mxu0 0.0
    %392 = vmatpush1.msra.mxu0 0.0
    %393 = vmatprep.subr.mxu0 0.0
    %394 = vmatpush1.msra.mxu0 0.0
    %395 = vmatprep.mubr.f32.mxu0 0.0
    %396 = vmatmul.mubr.f32.gmra.mrb[0].mxu0 %v329
    %v397 = vpop.f32.mrb[0].mxu0
    %v398 = vadd.f32 %v326, %v397
    %v399 = vpop.f32.mrb[0].mxu0
    %400 = vdwg.mxu0
    %401 = vst.msk [vmem:[#allocation2] sm:$0xff] %vm45, %v398
    // Predicated region
    $region46: #{score_network_forward.1} parent=1 // pred_check
      _
    $region47: #{score_network_forward.1} parent=1 // pred_check_branch
      %403 = sbr.rel (0) target = $region49
    $region48: #{score_network_forward.1} parent=1 // pred_region
      %s405 = ssub.s32 128, 128
      %406 = vsyncadd [#allocation3], %s405
      %s408 = sshll.u32 [#allocation2], 4
      %s409 = int_to_ptr.vmem [resolvable:$true] %s408
      %411 = dma.vmem_to_hbm [thread:$0]  %s409, 128, %s11, [#allocation3]
    $region49: #{score_network_forward.1} parent=1 // pred_fallthru
      _
    // Predicated region
    $region50: #{score_network_forward.1} parent=1 // pred_check
      _
    $region51: #{score_network_forward.1} parent=1 // pred_check_branch
      %413 = sbr.rel (0) target = $region53
    $region52: #{score_network_forward.1} parent=1 // pred_region
      %414 = dma.done [#allocation3], 128
    $region53: #{score_network_forward.1} parent=1 // pred_fallthru
      _
    %415 = vsyncpa [#allocation3], 1

</llo_original>
